<compile_context>
chip_gen: v6e
topology: v6e:2x2x1
jax: 0.10.0
libtpu: 0.0.40
codegen_flags: <defaults>
</compile_context>

<pallas_src>
import functools
from typing import NamedTuple

import jax
import jax.numpy as jnp
from jax.experimental import pallas as pl
from jax.experimental.pallas import tpu as pltpu

_LANE = 128       # lane tile (last dim)
_SUBLANE = 16     # bf16 sublane tile (second-to-last dim)


def _round_up(n, m):
    return ((n + m - 1) // m) * m


# -----------------------------------------------------------------------------
# Parameter init (mirrors QActor.__init__)
#   hidden layers: kaiming_normal (relu gain, fan_in), zero bias
#   output layer : PyTorch default uniform(+-1/sqrt(fan_in)) unless
#                  output_layer_init_std is given; zero bias
# -----------------------------------------------------------------------------
def init_qactor_params(key, state_size, action_parameter_size, action_size,
                       hidden_layers=(100,), output_layer_init_std=None):
    sizes = [state_size + action_parameter_size] + list(hidden_layers or []) \
            + [action_size]
    params = []
    keys = jax.random.split(key, len(sizes) - 1)
    for i in range(len(sizes) - 1):
        fan_in, fan_out = sizes[i], sizes[i + 1]
        if i < len(sizes) - 2:
            std = (2.0 / fan_in) ** 0.5      # kaiming_normal_, nonlinearity='relu'
            w = std * jax.random.normal(keys[i], (fan_in, fan_out), jnp.float32)
        elif output_layer_init_std is not None:
            w = output_layer_init_std * jax.random.normal(
                keys[i], (fan_in, fan_out), jnp.float32)
        else:
            bound = 1.0 / (fan_in ** 0.5)    # PyTorch nn.Linear default
            w = jax.random.uniform(keys[i], (fan_in, fan_out), jnp.float32,
                                   minval=-bound, maxval=bound)
        b = jnp.zeros((fan_out,), jnp.float32)
        params.append((w, b))                # W stored as (in, out): y = x @ W + b
    return params


# -----------------------------------------------------------------------------
# Packed-parameter layout description (static Python ints, baked into kernel).
# -----------------------------------------------------------------------------
class QActorLayout(NamedTuple):
    state_size: int
    ap_size: int
    action_size: int
    # first layer: (row_off W_state, row_off W_ap, row_off bias, d_out_pad)
    first: tuple
    # remaining layers: ((row_off W, d_in_pad, row_off bias, d_out_pad), ...)
    rest: tuple
    out_pad: int


# -----------------------------------------------------------------------------
# One-time packing: all weights + biases -> single 2-D bf16 buffer (one DMA).
#   * every layer's d_out padded to a multiple of 128 (lane-dense slices)
#   * every row block starts at a 16-aligned row (bf16 sublane tile)
#   * layer i>0's row block has prev-layer padded width rows (zero-filled),
#     so the padded activation columns multiply into zeros -> exact result.
# -----------------------------------------------------------------------------
def pack_qactor_params(params, state_size, action_parameter_size,
                       compute_dtype=jnp.bfloat16):
    n = len(params)
    assert params[0][0].shape[0] == state_size + action_parameter_size

    # ---- row layout ---------------------------------------------------------
    off = 0
    off_ws = off
    off = _round_up(off + state_size, _SUBLANE)
    off_wa = off
    off = _round_up(off + action_parameter_size, _SUBLANE)
    off_b0 = off
    off = off + _SUBLANE
    d_out_pad0 = _round_up(params[0][0].shape[1], _LANE)
    first = (off_ws, off_wa, off_b0, d_out_pad0)

    rest = []
    prev_out_pad = d_out_pad0
    for i in range(1, n):
        d_out_pad = _round_up(params[i][0].shape[1], _LANE)
        off_w = off
        off = off + prev_out_pad          # padded row count (16-aligned: 128k)
        off_b = off
        off = off + _SUBLANE
        rest.append((off_w, prev_out_pad, off_b, d_out_pad))
        prev_out_pad = d_out_pad

    total_rows = _round_up(off, _SUBLANE)
    width = max([d_out_pad0] + [r[3] for r in rest])

    # ---- fill ---------------------------------------------------------------
    buf = jnp.zeros((total_rows, width), compute_dtype)

    w0, b0 = params[0]
    d_out0 = w0.shape[1]
    buf = buf.at[off_ws:off_ws + state_size, :d_out0].set(
        w0[:state_size].astype(compute_dtype))
    buf = buf.at[off_wa:off_wa + action_parameter_size, :d_out0].set(
        w0[state_size:].astype(compute_dtype))
    buf = buf.at[off_b0, :d_out0].set(b0.astype(compute_dtype))

    for i, (off_w, _d_in_pad, off_b, _d_out_pad) in enumerate(rest, start=1):
        w, b = params[i]
        d_in, d_out = w.shape
        buf = buf.at[off_w:off_w + d_in, :d_out].set(w.astype(compute_dtype))
        buf = buf.at[off_b, :d_out].set(b.astype(compute_dtype))

    layout = QActorLayout(state_size=state_size,
                          ap_size=action_parameter_size,
                          action_size=params[-1][0].shape[1],
                          first=first, rest=tuple(rest),
                          out_pad=prev_out_pad)
    return buf, layout


# -----------------------------------------------------------------------------
# Kernel: fused MLP over one batch tile.
#   s_ref : (bt, state_size)  f32 state rows
#   a_ref : (bt, ap_size)     f32 action-parameter rows
#   p_ref : packed weights/biases (bf16), grid-invariant (resident)
#   q_ref : (bt, out_pad)     bf16 output (lane-dense, 128-padded)
# -----------------------------------------------------------------------------
def _qactor_kernel(s_ref, a_ref, p_ref, q_ref, *, layout, compute_dtype):
    off_ws, off_wa, off_b0, d_out0 = layout.first
    ss, ap = layout.state_size, layout.ap_size

    s = s_ref[...].astype(compute_dtype)
    a = a_ref[...].astype(compute_dtype)

    # Layer 1: fused "concat" as two MXU pushes (same cost, no HBM round trip).
    w_s = p_ref[off_ws:off_ws + ss, 0:d_out0]
    w_a = p_ref[off_wa:off_wa + ap, 0:d_out0]
    b0 = p_ref[off_b0:off_b0 + 1, 0:d_out0].astype(jnp.float32)
    y = (jnp.dot(s, w_s, preferred_element_type=jnp.float32)
         + jnp.dot(a, w_a, preferred_element_type=jnp.float32)
         + b0)

    n_rest = len(layout.rest)
    if n_rest == 0:
        # No hidden layers: the single layer is the output layer -> no ReLU.
        q_ref[...] = y.astype(q_ref.dtype)
        return

    x = jnp.maximum(y, 0.0).astype(compute_dtype)
    for j, (off_w, d_in, off_b, d_out) in enumerate(layout.rest):
        w = p_ref[off_w:off_w + d_in, 0:d_out]      # 16/128-aligned slice
        b = p_ref[off_b:off_b + 1, 0:d_out].astype(jnp.float32)
        y = jnp.dot(x, w, preferred_element_type=jnp.float32) + b
        if j < n_rest - 1:
            x = jnp.maximum(y, 0.0).astype(compute_dtype)   # hidden: relu
        else:
            q_ref[...] = y.astype(q_ref.dtype)               # output: linear


# -----------------------------------------------------------------------------
# Small-batch fallback (launch overhead >> compute for batch < ~64).
# -----------------------------------------------------------------------------
def _qactor_jnp(state, action_parameters, packed_buf, layout, *, compute_dtype):
    off_ws, off_wa, off_b0, d_out0 = layout.first
    s = state.astype(compute_dtype)
    a = action_parameters.astype(compute_dtype)
    w_s = packed_buf[off_ws:off_ws + layout.state_size, :d_out0]
    w_a = packed_buf[off_wa:off_wa + layout.ap_size, :d_out0]
    b0 = packed_buf[off_b0, :d_out0].astype(jnp.float32)
    y = (jnp.dot(s, w_s, preferred_element_type=jnp.float32)
         + jnp.dot(a, w_a, preferred_element_type=jnp.float32) + b0)
    n_rest = len(layout.rest)
    if n_rest == 0:
        return y[:, :layout.action_size]
    x = jnp.maximum(y, 0.0).astype(compute_dtype)
    for j, (off_w, d_in, off_b, d_out) in enumerate(layout.rest):
        w = packed_buf[off_w:off_w + d_in, :d_out]
        b = packed_buf[off_b, :d_out].astype(jnp.float32)
        y = jnp.dot(x, w, preferred_element_type=jnp.float32) + b
        if j < n_rest - 1:
            x = jnp.maximum(y, 0.0).astype(compute_dtype)
    return y[:, :layout.action_size]


# -----------------------------------------------------------------------------
# Public forward: QActor.forward(state, action_parameters) -> Q
# -----------------------------------------------------------------------------
def qactor_forward(state, action_parameters, packed_buf, layout, *,
                   compute_dtype=jnp.bfloat16, batch_tile=1024,
                   min_pallas_batch=64, out_dtype=jnp.float32):
    batch = state.shape[0]
    assert state.shape[1] == layout.state_size
    assert action_parameters.shape[1] == layout.ap_size
    assert packed_buf.dtype == compute_dtype

    # Tiny batches: skip the pallas_call entirely (prologue dominates).
    if batch < min_pallas_batch:
        q = _qactor_jnp(state, action_parameters, packed_buf, layout,
                        compute_dtype=compute_dtype)
        return q.astype(out_dtype)

    # Batch-tile selection:
    #  * batch_tile=1024 default (multiple of 256 -> full-height MXU pushes on
    #    v6e/v7x); per-tile VMEM is only a few hundred KiB, far under limits.
    #  * bt is a multiple of 16 (sublane-safe for f32 in / bf16 out blocks).
    #  * aim for >= 2 grid steps so the "parallel" batch axis can shard across
    #    both v7x TensorCores (a wash on single-TC v5e/v6e).
    bt = min(batch_tile, _round_up(pl.cdiv(batch, 2), _SUBLANE))
    if bt >= batch:
        bt = batch                       # single full block (block == array dim)
    grid = (pl.cdiv(batch, bt),)
    # NOTE: if batch % bt != 0 the last block reads padded/garbage rows; the
    # MLP is row-independent and Pallas drops out-of-range output rows, so the
    # result is still exact for all valid rows.

    out_pad = layout.out_pad

    # Advisory cost estimate (true action_size for the final layer's N).
    mm_dims = [(layout.state_size, layout.first[3]),
               (layout.ap_size, layout.first[3])]
    mm_dims += [(d_in, d_out) for (_, d_in, _, d_out) in layout.rest]
    if layout.rest:
        mm_dims[-1] = (layout.rest[-1][1], layout.action_size)
    else:
        mm_dims = [(layout.state_size, layout.action_size),
                   (layout.ap_size, layout.action_size)]
    flops = 2 * batch * sum(di * do for di, do in mm_dims)
    bytes_accessed = (state.size * state.dtype.itemsize
                      + action_parameters.size * action_parameters.dtype.itemsize
                      + packed_buf.size * packed_buf.dtype.itemsize
                      + batch * out_pad * jnp.dtype(compute_dtype).itemsize)

    kernel = functools.partial(_qactor_kernel, layout=layout,
                               compute_dtype=compute_dtype)

    q_pad = pl.pallas_call(
        kernel,
        out_shape=jax.ShapeDtypeStruct((batch, out_pad), compute_dtype),
        grid_spec=pltpu.PrefetchScalarGridSpec(
            num_scalar_prefetch=0,
            grid=grid,
            in_specs=[
                pl.BlockSpec((bt, layout.state_size), lambda i: (i, 0)),
                pl.BlockSpec((bt, layout.ap_size), lambda i: (i, 0)),
                # grid-invariant block: packed params DMA'd once, stay resident
                pl.BlockSpec(packed_buf.shape, lambda i: (0, 0)),
            ],
            out_specs=pl.BlockSpec((bt, out_pad), lambda i: (i, 0)),
        ),
        compiler_params=pltpu.CompilerParams(dimension_semantics=("parallel",)),
        cost_estimate=pl.CostEstimate(flops=flops, transcendentals=0,
                                      bytes_accessed=bytes_accessed),
    )(state, action_parameters, packed_buf)

    return q_pad[:, :layout.action_size].astype(out_dtype)


# -----------------------------------------------------------------------------
# Pure-JAX reference (same bf16-operand / f32-accumulation numerics, unpacked).
# -----------------------------------------------------------------------------
def qactor_reference(state, action_parameters, params, compute_dtype=jnp.bfloat16):
    x = jnp.concatenate([state, action_parameters], axis=1).astype(compute_dtype)
    n = len(params)
    y = None
    for i, (w, b) in enumerate(params):
        y = jnp.dot(x, w.astype(compute_dtype), preferred_element_type=jnp.float32)
        y = y + b.astype(jnp.float32)[None, :]
        if i < n - 1:
            x = jnp.maximum(y, 0.0).astype(compute_dtype)
    return y


if __name__ == "__main__":
    state_size = 16
    action_parameter_size = 8
    action_size = 4
    hidden_layers = (64, 32)

    key = jax.random.PRNGKey(0)
    k_par, k_s1, k_a1, k_s2, k_a2 = jax.random.split(key, 5)

    params = init_qactor_params(k_par, state_size, action_parameter_size,
                                action_size, hidden_layers)
    packed_buf, layout = pack_qactor_params(params, state_size,
                                            action_parameter_size)

    fwd = jax.jit(functools.partial(qactor_forward, layout=layout))

    # --- Pallas path, 2 grid steps (bt=64) ----------------------------------
    batch = 128
    state = jax.random.normal(k_s1, (batch, state_size), jnp.float32)
    ap = jax.random.normal(k_a1, (batch, action_parameter_size), jnp.float32)
    q = jax.block_until_ready(fwd(state, ap, packed_buf))
    q_ref = qactor_reference(state, ap, params)
    assert q.shape == (batch, action_size)
    assert jnp.allclose(q, q_ref, atol=2e-2, rtol=2e-2), "mismatch (batch=128)"

    # --- Pallas path, multi-step grid (batch_tile=128 -> 3 steps) -----------
    fwd_tiled = jax.jit(functools.partial(qactor_forward, layout=layout,
                                          batch_tile=128))
    batch2 = 384
    state2 = jax.random.normal(k_s2, (batch2, state_size), jnp.float32)
    ap2 = jax.random.normal(k_a2, (batch2, action_parameter_size), jnp.float32)
    q2 = jax.block_until_ready(fwd_tiled(state2, ap2, packed_buf))
    q2_ref = qactor_reference(state2, ap2, params)
    assert q2.shape == (batch2, action_size)
    assert jnp.allclose(q2, q2_ref, atol=2e-2, rtol=2e-2), "mismatch (batch=384)"

    # --- tiny batch exercises the jnp fallback -------------------------------
    q3 = jax.block_until_ready(fwd(state[:8], ap[:8], packed_buf))
    assert q3.shape == (8, action_size)
    assert jnp.allclose(q3, q_ref[:8], atol=2e-2, rtol=2e-2), "mismatch (batch=8)"

    print("KERNEL_OK")
</pallas_src>

<mosaic_0001>
module attributes {stable_mosaic.version = 11 : i64} {
  func.func @_qactor_kernel(%arg0: i32, %arg1: memref<64x16xf32, #tpu.memory_space<vmem>>, %arg2: memref<64x8xf32, #tpu.memory_space<vmem>>, %arg3: memref<336x128xbf16, #tpu.memory_space<vmem>>, %arg4: memref<64x128xbf16, #tpu.memory_space<vmem>>) attributes {dimension_semantics = [#tpu.dimension_semantics<parallel>], iteration_bounds = array<i64: 2>, scalar_prefetch = 0 : i64, scratch_operands = 0 : i64, tpu.core_type = #tpu.core_type<tc>, window_params = [{transform_indices = @transform_0, window_bounds = array<i64: 64, 16>}, {transform_indices = @transform_1, window_bounds = array<i64: 64, 8>}, {pipeline_mode = #tpu.pipeline_mode<synchronous>, transform_indices = @transform_2, window_bounds = array<i64: 336, 128>}, {transform_indices = @transform_3, window_bounds = array<i64: 64, 128>}]} {
    %c0 = arith.constant 0 : index
    %c0_0 = arith.constant 0 : index
    %0 = vector.load %arg1[%c0, %c0_0] : memref<64x16xf32, #tpu.memory_space<vmem>>, vector<64x16xf32>
    %1 = arith.truncf %0 : vector<64x16xf32> to vector<64x16xbf16>
    %c0_1 = arith.constant 0 : index
    %c0_2 = arith.constant 0 : index
    %2 = vector.load %arg2[%c0_1, %c0_2] : memref<64x8xf32, #tpu.memory_space<vmem>>, vector<64x8xf32>
    %3 = arith.truncf %2 : vector<64x8xf32> to vector<64x8xbf16>
    %c0_3 = arith.constant 0 : index
    %c0_4 = arith.constant 0 : index
    %4 = vector.load %arg3[%c0_3, %c0_4] : memref<336x128xbf16, #tpu.memory_space<vmem>>, vector<16x128xbf16>
    %c16 = arith.constant 16 : index
    %c0_5 = arith.constant 0 : index
    %5 = vector.load %arg3[%c16, %c0_5] : memref<336x128xbf16, #tpu.memory_space<vmem>>, vector<8x128xbf16>
    %c32 = arith.constant 32 : index
    %c0_6 = arith.constant 0 : index
    %6 = vector.load %arg3[%c32, %c0_6] : memref<336x128xbf16, #tpu.memory_space<vmem>>, vector<1x128xbf16>
    %7 = arith.extf %6 : vector<1x128xbf16> to vector<1x128xf32>
    %cst = arith.constant dense<0.000000e+00> : vector<64x128xf32>
    %8 = tpu.matmul %1, %4, %cst {dimension_numbers = #tpu.dot_dimension_numbers<[1], [0], [0], [1], [0, 0, 1, 1], [], []>} : vector<64x16xbf16>, vector<16x128xbf16>, vector<64x128xf32> -> vector<64x128xf32>
    %cst_7 = arith.constant dense<0.000000e+00> : vector<64x128xf32>
    %9 = tpu.matmul %3, %5, %cst_7 {dimension_numbers = #tpu.dot_dimension_numbers<[1], [0], [0], [1], [0, 0, 1, 1], [], []>} : vector<64x8xbf16>, vector<8x128xbf16>, vector<64x128xf32> -> vector<64x128xf32>
    %10 = arith.addf %8, %9 : vector<64x128xf32>
    %11 = vector.broadcast %7 : vector<1x128xf32> to vector<64x128xf32>
    %12 = arith.addf %10, %11 : vector<64x128xf32>
    %cst_8 = arith.constant 0.000000e+00 : f32
    %13 = vector.broadcast %cst_8 : f32 to vector<64x128xf32>
    %14 = arith.maximumf %12, %13 : vector<64x128xf32>
    %15 = arith.truncf %14 : vector<64x128xf32> to vector<64x128xbf16>
    %c48 = arith.constant 48 : index
    %c0_9 = arith.constant 0 : index
    %16 = vector.load %arg3[%c48, %c0_9] : memref<336x128xbf16, #tpu.memory_space<vmem>>, vector<128x128xbf16>
    %c176 = arith.constant 176 : index
    %c0_10 = arith.constant 0 : index
    %17 = vector.load %arg3[%c176, %c0_10] : memref<336x128xbf16, #tpu.memory_space<vmem>>, vector<1x128xbf16>
    %18 = arith.extf %17 : vector<1x128xbf16> to vector<1x128xf32>
    %cst_11 = arith.constant dense<0.000000e+00> : vector<64x128xf32>
    %19 = tpu.matmul %15, %16, %cst_11 {dimension_numbers = #tpu.dot_dimension_numbers<[1], [0], [0], [1], [0, 0, 1, 1], [], []>} : vector<64x128xbf16>, vector<128x128xbf16>, vector<64x128xf32> -> vector<64x128xf32>
    %20 = vector.broadcast %18 : vector<1x128xf32> to vector<64x128xf32>
    %21 = arith.addf %19, %20 : vector<64x128xf32>
    %cst_12 = arith.constant 0.000000e+00 : f32
    %22 = vector.broadcast %cst_12 : f32 to vector<64x128xf32>
    %23 = arith.maximumf %21, %22 : vector<64x128xf32>
    %24 = arith.truncf %23 : vector<64x128xf32> to vector<64x128xbf16>
    %c192 = arith.constant 192 : index
    %c0_13 = arith.constant 0 : index
    %25 = vector.load %arg3[%c192, %c0_13] : memref<336x128xbf16, #tpu.memory_space<vmem>>, vector<128x128xbf16>
    %c320 = arith.constant 320 : index
    %c0_14 = arith.constant 0 : index
    %26 = vector.load %arg3[%c320, %c0_14] : memref<336x128xbf16, #tpu.memory_space<vmem>>, vector<1x128xbf16>
    %27 = arith.extf %26 : vector<1x128xbf16> to vector<1x128xf32>
    %cst_15 = arith.constant dense<0.000000e+00> : vector<64x128xf32>
    %28 = tpu.matmul %24, %25, %cst_15 {dimension_numbers = #tpu.dot_dimension_numbers<[1], [0], [0], [1], [0, 0, 1, 1], [], []>} : vector<64x128xbf16>, vector<128x128xbf16>, vector<64x128xf32> -> vector<64x128xf32>
    %29 = vector.broadcast %27 : vector<1x128xf32> to vector<64x128xf32>
    %30 = arith.addf %28, %29 : vector<64x128xf32>
    %31 = arith.truncf %30 : vector<64x128xf32> to vector<64x128xbf16>
    %c0_16 = arith.constant 0 : index
    %c0_17 = arith.constant 0 : index
    %32 = vector.load %arg4[%c0_16, %c0_17] : memref<64x128xbf16, #tpu.memory_space<vmem>>, vector<64x128xbf16>
    tpu.vector_store %arg4[%c0_16, %c0_17], %31 {strides = array<i32>} : memref<64x128xbf16, #tpu.memory_space<vmem>>, vector<64x128xbf16>,
    return
  }
  func.func @transform_0(%arg0: i32) -> (i32, i32) {
    %c0_i32 = arith.constant 0 : i32
    %c0_i32_0 = arith.constant 0 : i32
    return %arg0, %c0_i32 : i32, i32
  }
  func.func @transform_1(%arg0: i32) -> (i32, i32) {
    %c0_i32 = arith.constant 0 : i32
    %c0_i32_0 = arith.constant 0 : i32
    return %arg0, %c0_i32 : i32, i32
  }
  func.func @transform_2(%arg0: i32) -> (i32, i32) {
    %c0_i32 = arith.constant 0 : i32
    %c0_i32_0 = arith.constant 0 : i32
    %c0_i32_1 = arith.constant 0 : i32
    return %c0_i32, %c0_i32_0 : i32, i32
  }
  func.func @transform_3(%arg0: i32) -> (i32, i32) {
    %c0_i32 = arith.constant 0 : i32
    %c0_i32_0 = arith.constant 0 : i32
    return %arg0, %c0_i32 : i32, i32
  }
}

</mosaic_0001>

<llo_original>
// kernel: qactor_forward.1
$region0: #{qactor_forward.1}
  #allocation0 [shape = 'u32[]', space=smem, size = 0x4, offset = 0x4, fixed_abs, tag = 'smem constant byte address 0x4 - core index']
  #allocation1 [shape = 'u32[144,128]{1,0:T(1,128)}', space=vmem, size = 0x12000, scoped, tag = 'internal scratch']
  %s0 = inlined_call_operand.vmem [shape: f32[128,16], index: 0, kind: input, shape index: {}]
  %s1 = inlined_call_operand.vmem [shape: f32[128,8], index: 1, kind: input, shape index: {}]
  %s2 = inlined_call_operand.vmem [shape: bf16[336,128], index: 2, kind: input, shape index: {}]
  %s3 = inlined_call_operand.vmem [shape: bf16[128,128], index: 3, kind: output, shape index: {}]
  %s4 = sld [smem:[#allocation0]]
  $region45: #{qactor_forward.1} parent=0
    _
  %s6 = ssub.s32 1, %s4
  %s7 = scalar_select 0, %s6, %s4
  loop: start=0, step=1, limit=4
  $region2: #{qactor_forward.1} parent=0 // loop_pre_header
    _
  $region3: #{qactor_forward.1} parent=0 // loop_header
    %s9 = sphi 0, %s13
    %p10 = scmp.ge.s32.totalorder %s9, 4
    %s19 = sphi 0, %s21
    %s22 = sphi 0, %s19
    %s23 = sphi 0, %s22
    %s39 = sphi 0, %s23
    %s45 = sphi 0, %s47
    %s48 = sphi 0, %s45
    %s49 = sphi 0, %s48
    %s65 = sphi 0, %s49
    %s69 = sphi 0, %s69
    %s71 = sphi 0, %s69
    %s72 = sphi 0, %s71
    %s86 = sphi 0, %s72
    %s92 = sphi 0, %s94
    %s95 = sphi 0, %s92
    %s96 = sphi 0, %s95
    %s112 = sphi 0, %s96
  $region4: #{qactor_forward.1} parent=0 // loop_header_branch
    %12 = sbr.rel (%p10) target = $region8
  $region5: #{qactor_forward.1} parent=0 // loop_body
    %s14 = ssub.s32 %s9, 1
    %s15 = ssub.s32 %s9, 2
    %s16 = sadd.s32 %s9, 1
    %s17 = ssub.s32 %s9, %s16
    %p18 = scmp.eq.s32.totalorder %s17, 0
    %s20 = sadd.s32 %s19, 1
    %s21 = scalar_select %p18, %s19, %s20
    %p24 = pneg %p18
    %p25 = scmp.eq.s32.totalorder %s9, 1
    %p26 = por %p24, %p25
    %p27 = scmp.ne.s32.totalorder %s19, %s22
    %p28 = scmp.eq.s32.totalorder %s9, 0
    %p29 = por %p27, %p28
    %p30 = scmp.ne.s32.totalorder %s19, %s22
    %p31 = scmp.eq.s32.totalorder %s14, 1
    %p32 = por %p30, %p31
    %p33 = scmp.ne.s32.totalorder %s22, %s23
    %p34 = scmp.eq.s32.totalorder %s14, 0
    %p35 = por %p33, %p34
    %p36 = scmp.ne.s32.totalorder %s22, %s23
    %p37 = scmp.eq.s32.totalorder %s15, 1
    %p38 = por %p36, %p37
    %p40 = scmp.ne.s32.totalorder %s23, %s39
    %p41 = scmp.eq.s32.totalorder %s15, 0
    %p42 = por %p40, %p41
    %s43 = ssub.s32 %s9, %s16
    %p44 = scmp.eq.s32.totalorder %s43, 0
    %s46 = sadd.s32 %s45, 1
    %s47 = scalar_select %p44, %s45, %s46
    %p50 = pneg %p44
    %p51 = scmp.eq.s32.totalorder %s9, 1
    %p52 = por %p50, %p51
    %p53 = scmp.ne.s32.totalorder %s45, %s48
    %p54 = scmp.eq.s32.totalorder %s9, 0
    %p55 = por %p53, %p54
    %p56 = scmp.ne.s32.totalorder %s45, %s48
    %p57 = scmp.eq.s32.totalorder %s14, 1
    %p58 = por %p56, %p57
    %p59 = scmp.ne.s32.totalorder %s48, %s49
    %p60 = scmp.eq.s32.totalorder %s14, 0
    %p61 = por %p59, %p60
    %p62 = scmp.ne.s32.totalorder %s48, %s49
    %p63 = scmp.eq.s32.totalorder %s15, 1
    %p64 = por %p62, %p63
    %p66 = scmp.ne.s32.totalorder %s49, %s65
    %p67 = scmp.eq.s32.totalorder %s15, 0
    %p68 = por %p66, %p67
    %s70 = sadd.s32 %s69, 1
    %p73 = scmp.eq.s32.totalorder %s9, 1
    %p74 = scmp.ne.s32.totalorder %s69, %s71
    %p75 = scmp.eq.s32.totalorder %s9, 0
    %p76 = por %p74, %p75
    %p77 = scmp.ne.s32.totalorder %s69, %s71
    %p78 = scmp.eq.s32.totalorder %s14, 1
    %p79 = por %p77, %p78
    %p80 = scmp.ne.s32.totalorder %s71, %s72
    %p81 = scmp.eq.s32.totalorder %s14, 0
    %p82 = por %p80, %p81
    %p83 = scmp.ne.s32.totalorder %s71, %s72
    %p84 = scmp.eq.s32.totalorder %s15, 1
    %p85 = por %p83, %p84
    %p87 = scmp.ne.s32.totalorder %s72, %s86
    %p88 = scmp.eq.s32.totalorder %s15, 0
    %p89 = por %p87, %p88
    %s90 = ssub.s32 %s9, %s16
    %p91 = scmp.eq.s32.totalorder %s90, 0
    %s93 = sadd.s32 %s92, 1
    %s94 = scalar_select %p91, %s92, %s93
    %p97 = pneg %p91
    %p98 = scmp.eq.s32.totalorder %s9, 1
    %p99 = por %p97, %p98
    %p100 = scmp.ne.s32.totalorder %s92, %s95
    %p101 = scmp.eq.s32.totalorder %s9, 0
    %p102 = por %p100, %p101
    %p103 = scmp.ne.s32.totalorder %s92, %s95
    %p104 = scmp.eq.s32.totalorder %s14, 1
    %p105 = por %p103, %p104
    %p106 = scmp.ne.s32.totalorder %s95, %s96
    %p107 = scmp.eq.s32.totalorder %s14, 0
    %p108 = por %p106, %p107
    %p109 = scmp.ne.s32.totalorder %s95, %s96
    %p110 = scmp.eq.s32.totalorder %s15, 1
    %p111 = por %p109, %p110
    %p113 = scmp.ne.s32.totalorder %s96, %s112
    %p114 = scmp.eq.s32.totalorder %s15, 0
    %p115 = por %p113, %p114
    %p116 = scmp.le.s32.totalorder 1, %s9
    %p117 = scmp.lt.s32.totalorder %s9, 3
    %p118 = pnand %p116, %p117
    %p119 = pneg %p118
    // Predicated region
    $region9: #{qactor_forward.1} parent=5 // pred_check
      _
    $region10: #{qactor_forward.1} parent=5 // pred_check_branch
      %121 = sbr.rel (%p118) target = $region12
    $region11: #{qactor_forward.1} parent=5 // pred_region
      %s122 = ssub.s32 %s9, 1
      // Predicated region
      $region13: #{qactor_forward.1} parent=11 // pred_check
        %p123 = pneg %p82
      $region14: #{qactor_forward.1} parent=11 // pred_check_branch
        %125 = sbr.rel (%p123) target = $region16
      $region15: #{qactor_forward.1} parent=11 // pred_region
        _
      $region16: #{qactor_forward.1} parent=11 // pred_fallthru
        _
    $region12: #{qactor_forward.1} parent=5 // pred_fallthru
      _
    %p126 = scmp.lt.s32.totalorder %s9, 2
    // Predicated region
    $region17: #{qactor_forward.1} parent=5 // pred_check
      %p127 = pneg %p126
    $region18: #{qactor_forward.1} parent=5 // pred_check_branch
      %129 = sbr.rel (%p127) target = $region20
    $region19: #{qactor_forward.1} parent=5 // pred_region
      // Predicated region
      $region21: #{qactor_forward.1} parent=19 // pred_check
        %p130 = pneg %p29
      $region22: #{qactor_forward.1} parent=19 // pred_check_branch
        %132 = sbr.rel (%p130) target = $region24
      $region23: #{qactor_forward.1} parent=19 // pred_region
        %s133 = smul.u32 8, %s9
        %p134 = scmp.lt.s32.totalorder %s133, 15
        %s135 = scalar_select %p134, %s133, 15
        %s136 = smul.addr %s135, 8
        %s137 = scalar_lea.vmem %s0, %s136
        %s138 = smul.u32 8, %s9
      $region24: #{qactor_forward.1} parent=19 // pred_fallthru
        _
      // Predicated region
      $region25: #{qactor_forward.1} parent=19 // pred_check
        %p139 = pneg %p55
      $region26: #{qactor_forward.1} parent=19 // pred_check_branch
        %141 = sbr.rel (%p139) target = $region28
      $region27: #{qactor_forward.1} parent=19 // pred_region
        %s142 = smul.u32 8, %s9
        %p143 = scmp.lt.s32.totalorder %s142, 15
        %s144 = scalar_select %p143, %s142, 15
        %s145 = smul.addr %s144, 8
        %s146 = scalar_lea.vmem %s1, %s145
        %s147 = smul.u32 8, %s9
      $region28: #{qactor_forward.1} parent=19 // pred_fallthru
        _
    $region20: #{qactor_forward.1} parent=5 // pred_fallthru
      _
    %p148 = scmp.le.s32.totalorder 1, %s9
    %p149 = scmp.lt.s32.totalorder %s9, 3
    %p150 = pnand %p148, %p149
    %p151 = pneg %p150
    // Predicated region
    $region29: #{qactor_forward.1} parent=5 // pred_check
      _
    $region30: #{qactor_forward.1} parent=5 // pred_check_branch
      %153 = sbr.rel (%p150) target = $region32
    $region31: #{qactor_forward.1} parent=5 // pred_region
      %s154 = ssub.s32 %s9, 1
      %s155 = smul.u32 8, %s14
      %p156 = scmp.lt.s32.totalorder %s155, 15
      %s157 = scalar_select %p156, %s155, 15
      %s158 = smul.addr %s157, 8
      %s159 = scalar_lea.vmem %s0, %s158
      %p160 = pneg %p35
      %p161 = pneg %p32
      %s162 = smul.u32 8, %s14
      %p163 = scmp.lt.s32.totalorder %s162, 15
      %s164 = scalar_select %p163, %s162, 15
      %s165 = smul.addr %s164, 8
      %s166 = scalar_lea.vmem %s1, %s165
      %p167 = pneg %p61
      %p168 = pneg %p58
      %p169 = pneg %p82
      %p170 = pneg %p79
      %p171 = pneg %p108
      %p172 = pneg %p105
      %s173 = smul.u32 8, %s14
      %p174 = scmp.lt.s32.totalorder %s173, 15
      %s175 = scalar_select %p174, %s173, 15
      %s176 = smul.addr %s175, 4
      %s177 = scalar_lea.vmem %s3, %s176
      %s178 = smul.u32 8, %s14
      %p179 = scmp.lt.s32.totalorder %s178, 15
      %s180 = scalar_select %p179, %s178, 15
      %s181 = smul.addr %s180, 8
      %s182 = scalar_lea.vmem %s0, %s181
      %s183 = smul.u32 8, %s14
      %s184 = smul.u32 8, %s14
      %p185 = scmp.lt.s32.totalorder %s184, 15
      %s186 = scalar_select %p185, %s184, 15
      %s187 = smul.addr %s186, 8
      %s188 = scalar_lea.vmem %s1, %s187
      %s189 = smul.u32 8, %s14
      %s190 = smul.u32 8, %s14
      %p191 = scmp.lt.s32.totalorder %s190, 15
      %s192 = scalar_select %p191, %s190, 15
      %s193 = smul.addr %s192, 4
      %s194 = scalar_lea.vmem %s3, %s193
      %s195 = smul.u32 8, %s14
      %v197 = vld [vmem:[%s182] sm:$0xff]
      %v198 = vld [vmem:[%s182 + $0x8] sm:$0xff]
      %v199 = vld [vmem:[%s182 + $0x10] sm:$0xff]
      %v200 = vld [vmem:[%s182 + $0x18] sm:$0xff]
      %v201 = vld [vmem:[%s182 + $0x20] sm:$0xff]
      %v202 = vld [vmem:[%s182 + $0x28] sm:$0xff]
      %v203 = vld [vmem:[%s182 + $0x30] sm:$0xff]
      %v204 = vld [vmem:[%s182 + $0x38] sm:$0xff]
      %v205 = vpack.c.bf16 %v198, %v197
      %v206 = vpack.c.bf16 %v200, %v199
      %v207 = vpack.c.bf16 %v202, %v201
      %v208 = vpack.c.bf16 %v204, %v203
      %v209 = vld [vmem:[%s188] sm:$0xff]
      %v210 = vld [vmem:[%s188 + $0x8] sm:$0xff]
      %v211 = vld [vmem:[%s188 + $0x10] sm:$0xff]
      %v212 = vld [vmem:[%s188 + $0x18] sm:$0xff]
      %v213 = vld [vmem:[%s188 + $0x20] sm:$0xff]
      %v214 = vld [vmem:[%s188 + $0x28] sm:$0xff]
      %v215 = vld [vmem:[%s188 + $0x30] sm:$0xff]
      %v216 = vld [vmem:[%s188 + $0x38] sm:$0xff]
      %v217 = vpack.c.bf16 %v210, %v209
      %v218 = vpack.c.bf16 %v212, %v211
      %v219 = vpack.c.bf16 %v214, %v213
      %v220 = vpack.c.bf16 %v216, %v215
      %v221 = vld [vmem:[%s2] sm:$0xf]
      %v222 = vld [vmem:[%s2 + $0x4] sm:$0xf]
      %v223 = vld [vmem:[%s2 + $0x8] sm:$0xf]
      %v224 = vld [vmem:[%s2 + $0x10] sm:$0x1]
      %v225 = vunpack.c.l.bf16 %v224
      %vm226 = vcmask 64512
      %v228 = vsel %vm226, %v217, 0
      %v231 = vsel %vm226, %v218, 0
      %v234 = vsel %vm226, %v219, 0
      %v237 = vsel %vm226, %v220, 0
      %vm239 = vcmask 1043456
      %v241 = vsel %vm239, %v223, 0
      %243 = vmatprep.subr.bf16.mxu0 0
      %244 = vmatpush1.bf16.msra.mxu0 0
      %245 = vmatprep.subr.bf16.mxu0 0
      %246 = vmatpush1.bf16.msra.mxu0 0
      %247 = vmatprep.subr.bf16.mxu0 0
      %248 = vmatpush1.bf16.msra.mxu0 0
      %249 = vmatprep.subr.bf16.mxu0 0
      %250 = vmatpush1.bf16.msra.mxu0 0
      %251 = vmatprep.subr.bf16.mxu0 0
      %252 = vmatpush1.bf16.msra.mxu0 0
      %253 = vmatprep.subr.bf16.mxu0 0
      %254 = vmatpush1.bf16.msra.mxu0 0
      %255 = vmatprep.subr.bf16.mxu0 0
      %256 = vmatpush1.bf16.msra.mxu0 0
      %257 = vmatprep.subr.bf16.mxu0 0
      %258 = vmatpush1.bf16.msra.mxu0 %v241
      %259 = vmatprep.subr.bf16.mxu0 0
      %260 = vmatpush2.bf16.msra.mxu0 0
      %261 = vmatprep.subr.bf16.mxu0 0
      %262 = vmatpush2.bf16.msra.mxu0 0
      %263 = vmatprep.subr.bf16.mxu0 0
      %264 = vmatpush2.bf16.msra.mxu0 0
      %265 = vmatprep.subr.bf16.mxu0 0
      %266 = vmatpush2.bf16.msra.mxu0 0
      %267 = vmatprep.subr.bf16.mxu0 0
      %268 = vmatpush2.bf16.msra.mxu0 0
      %269 = vmatprep.subr.bf16.mxu0 0
      %270 = vmatpush2.bf16.msra.mxu0 0
      %271 = vmatprep.subr.bf16.mxu0 0
      %272 = vmatpush2.bf16.msra.mxu0 0
      %273 = vmatprep.subr.bf16.mxu0 0
      %274 = vmatpush2.bf16.msra.mxu0 0
      %275 = vmatprep.mubr.bf16.mxu0 0
      %276 = vmatmul.mubr.bf16.gmra.mxu0 %v228
      %v277 = vpop.f32.mrf.mxu0
      %v278 = vadd.f32 0.0, %v277
      %v279 = vpop.f32.mrf.mxu0
      %v280 = vpop.f32.mrf.mxu0
      %v281 = vadd.f32 0.0, %v280
      %v282 = vpop.f32.mrf.mxu0
      %283 = vmatprep.mubr.bf16.mxu0 0
      %284 = vmatmul.mubr.bf16.gmra.mxu0 %v231
      %v285 = vpop.f32.mrf.mxu0
      %v286 = vadd.f32 0.0, %v285
      %v287 = vpop.f32.mrf.mxu0
      %v288 = vpop.f32.mrf.mxu0
      %v289 = vadd.f32 0.0, %v288
      %v290 = vpop.f32.mrf.mxu0
      %291 = vmatprep.mubr.bf16.mxu0 0
      %292 = vmatmul.mubr.bf16.gmra.mxu0 %v234
      %v293 = vpop.f32.mrf.mxu0
      %v294 = vadd.f32 0.0, %v293
      %v295 = vpop.f32.mrf.mxu0
      %v296 = vpop.f32.mrf.mxu0
      %v297 = vadd.f32 0.0, %v296
      %v298 = vpop.f32.mrf.mxu0
      %299 = vmatprep.mubr.bf16.mxu0 0
      %300 = vmatmul.mubr.bf16.gmra.mxu0 %v237
      %v301 = vpop.f32.mrf.mxu0
      %v302 = vadd.f32 0.0, %v301
      %v303 = vpop.f32.mrf.mxu0
      %v304 = vpop.f32.mrf.mxu0
      %v305 = vadd.f32 0.0, %v304
      %v306 = vpop.f32.mrf.mxu0
      %307 = vdwg.mxu0
      %v310 = vunpack.c.l.b16 %v221
      %v311 = vunpack.c.l.b16 %v222
      %v312 = vpack.c.b16 %v311, %v310
      %vm314 = vcmask 130048
      %v316 = vsel %vm314, %v205, 0
      %v319 = vsel %vm314, %v206, 0
      %v322 = vsel %vm314, %v207, 0
      %v325 = vsel %vm314, %v208, 0
      %327 = vmatprep.subr.bf16.mxu0 0
      %328 = vmatpush1.bf16.msra.mxu0 0
      %329 = vmatprep.subr.bf16.mxu0 0
      %330 = vmatpush1.bf16.msra.mxu0 0
      %331 = vmatprep.subr.bf16.mxu0 0
      %332 = vmatpush1.bf16.msra.mxu0 0
      %333 = vmatprep.subr.bf16.mxu0 0
      %334 = vmatpush1.bf16.msra.mxu0 0
      %335 = vmatprep.subr.bf16.mxu0 0
      %336 = vmatpush1.bf16.msra.mxu0 0
      %337 = vmatprep.subr.bf16.mxu0 0
      %338 = vmatpush1.bf16.msra.mxu0 0
      %339 = vmatprep.subr.bf16.mxu0 0
      %340 = vmatpush1.bf16.msra.mxu0 0
      %341 = vmatprep.subr.bf16.mxu0 0
      %342 = vmatpush1.bf16.msra.mxu0 %v312
      %343 = vmatprep.subr.bf16.mxu0 0
      %344 = vmatpush2.bf16.msra.mxu0 0
      %345 = vmatprep.subr.bf16.mxu0 0
      %346 = vmatpush2.bf16.msra.mxu0 0
      %347 = vmatprep.subr.bf16.mxu0 0
      %348 = vmatpush2.bf16.msra.mxu0 0
      %349 = vmatprep.subr.bf16.mxu0 0
      %350 = vmatpush2.bf16.msra.mxu0 0
      %351 = vmatprep.subr.bf16.mxu0 0
      %352 = vmatpush2.bf16.msra.mxu0 0
      %353 = vmatprep.subr.bf16.mxu0 0
      %354 = vmatpush2.bf16.msra.mxu0 0
      %355 = vmatprep.subr.bf16.mxu0 0
      %356 = vmatpush2.bf16.msra.mxu0 0
      %357 = vmatprep.subr.bf16.mxu0 0
      %358 = vmatpush2.bf16.msra.mxu0 0
      %359 = vmatprep.mubr.bf16.mxu0 0
      %360 = vmatmul.mubr.bf16.gmra.mxu0 %v316
      %v361 = vpop.f32.mrf.mxu0
      %v362 = vadd.f32 %v278, %v361
      %v363 = vpop.f32.mrf.mxu0
      %v364 = vpop.f32.mrf.mxu0
      %v365 = vadd.f32 %v281, %v364
      %v366 = vpop.f32.mrf.mxu0
      %367 = vmatprep.mubr.bf16.mxu0 0
      %368 = vmatmul.mubr.bf16.gmra.mxu0 %v319
      %v369 = vpop.f32.mrf.mxu0
      %v370 = vadd.f32 %v286, %v369
      %v371 = vpop.f32.mrf.mxu0
      %v372 = vpop.f32.mrf.mxu0
      %v373 = vadd.f32 %v289, %v372
      %v374 = vpop.f32.mrf.mxu0
      %375 = vmatprep.mubr.bf16.mxu0 0
      %376 = vmatmul.mubr.bf16.gmra.mxu0 %v322
      %v377 = vpop.f32.mrf.mxu0
      %v378 = vadd.f32 %v294, %v377
      %v379 = vpop.f32.mrf.mxu0
      %v380 = vpop.f32.mrf.mxu0
      %v381 = vadd.f32 %v297, %v380
      %v382 = vpop.f32.mrf.mxu0
      %383 = vmatprep.mubr.bf16.mxu0 0
      %384 = vmatmul.mubr.bf16.gmra.mxu0 %v325
      %v385 = vpop.f32.mrf.mxu0
      %v386 = vadd.f32 %v302, %v385
      %v387 = vpop.f32.mrf.mxu0
      %v388 = vpop.f32.mrf.mxu0
      %v389 = vadd.f32 %v305, %v388
      %v390 = vpop.f32.mrf.mxu0
      %391 = vdwg.mxu0
      %v392 = vlaneseq
      %v393 = vshrl.u32 %v392, 7
      %v394 = vsub.s32 0, %v393
      %v395 = vrot.slane %v225, %v394
      %v396 = vadd.f32 %v362, %v395
      %v397 = vadd.f32 %v365, %v395
      %v398 = vadd.f32 %v370, %v395
      %v399 = vadd.f32 %v373, %v395
      %v400 = vadd.f32 %v378, %v395
      %v401 = vadd.f32 %v381, %v395
      %v402 = vadd.f32 %v386, %v395
      %v403 = vadd.f32 %v389, %v395
      %v404 = vmax.f32 %v396, 0.0
      %v405 = vmax.f32 %v397, 0.0
      %v406 = vmax.f32 %v398, 0.0
      %v407 = vmax.f32 %v399, 0.0
      %v408 = vmax.f32 %v400, 0.0
      %v409 = vmax.f32 %v401, 0.0
      %v410 = vmax.f32 %v402, 0.0
      %v411 = vmax.f32 %v403, 0.0
      %v412 = vpack.c.bf16 %v405, %v404
      %v413 = vpack.c.bf16 %v407, %v406
      %v414 = vpack.c.bf16 %v409, %v408
      %v415 = vpack.c.bf16 %v411, %v410
      %v416 = vld [vmem:[%s2 + $0x18] sm:$0xf]
      %v417 = vld [vmem:[%s2 + $0x1c] sm:$0xf]
      %v418 = vld [vmem:[%s2 + $0x20] sm:$0xf]
      %v419 = vld [vmem:[%s2 + $0x24] sm:$0xf]
      %v420 = vld [vmem:[%s2 + $0x28] sm:$0xf]
      %v421 = vld [vmem:[%s2 + $0x2c] sm:$0xf]
      %v422 = vld [vmem:[%s2 + $0x30] sm:$0xf]
      %v423 = vld [vmem:[%s2 + $0x34] sm:$0xf]
      %v424 = vld [vmem:[%s2 + $0x38] sm:$0xf]
      %v425 = vld [vmem:[%s2 + $0x3c] sm:$0xf]
      %v426 = vld [vmem:[%s2 + $0x40] sm:$0xf]
      %v427 = vld [vmem:[%s2 + $0x44] sm:$0xf]
      %v428 = vld [vmem:[%s2 + $0x48] sm:$0xf]
      %v429 = vld [vmem:[%s2 + $0x4c] sm:$0xf]
      %v430 = vld [vmem:[%s2 + $0x50] sm:$0xf]
      %v431 = vld [vmem:[%s2 + $0x54] sm:$0xf]
      %v432 = vld [vmem:[%s2 + $0x58] sm:$0x1]
      %v433 = vunpack.c.l.bf16 %v432
      %v434 = vlaneseq
      %v435 = vshrl.u32 %v434, 7
      %v436 = vsub.s32 0, %v435
      %v437 = vrot.slane %v433, %v436
      %v454 = vunpack.c.l.b16 %v416
      %v455 = vunpack.c.l.b16 %v417
      %v456 = vunpack.c.l.b16 %v418
      %v457 = vunpack.c.l.b16 %v419
      %v458 = vunpack.c.l.b16 %v420
      %v459 = vunpack.c.l.b16 %v421
      %v460 = vunpack.c.l.b16 %v422
      %v461 = vunpack.c.l.b16 %v423
      %v462 = vunpack.c.l.b16 %v424
      %v463 = vunpack.c.l.b16 %v425
      %v464 = vunpack.c.l.b16 %v426
      %v465 = vunpack.c.l.b16 %v427
      %v466 = vunpack.c.l.b16 %v428
      %v467 = vunpack.c.l.b16 %v429
      %v468 = vunpack.c.l.b16 %v430
      %v469 = vunpack.c.l.b16 %v431
      %v470 = vpack.c.b16 %v455, %v454
      %v471 = vpack.c.b16 %v457, %v456
      %v472 = vpack.c.b16 %v459, %v458
      %v473 = vpack.c.b16 %v461, %v460
      %v474 = vpack.c.b16 %v463, %v462
      %v475 = vpack.c.b16 %v465, %v464
      %v476 = vpack.c.b16 %v467, %v466
      %v477 = vpack.c.b16 %v469, %v468
      %486 = vmatprep.subr.bf16.mxu0 0
      %487 = vmatpush1.bf16.msra.mxu0 %v477
      %488 = vmatprep.subr.bf16.mxu0 0
      %489 = vmatpush1.bf16.msra.mxu0 %v476
      %490 = vmatprep.subr.bf16.mxu0 0
      %491 = vmatpush1.bf16.msra.mxu0 %v475
      %492 = vmatprep.subr.bf16.mxu0 0
      %493 = vmatpush1.bf16.msra.mxu0 %v474
      %494 = vmatprep.subr.bf16.mxu0 0
      %495 = vmatpush1.bf16.msra.mxu0 %v473
      %496 = vmatprep.subr.bf16.mxu0 0
      %497 = vmatpush1.bf16.msra.mxu0 %v472
      %498 = vmatprep.subr.bf16.mxu0 0
      %499 = vmatpush1.bf16.msra.mxu0 %v471
      %500 = vmatprep.subr.bf16.mxu0 0
      %501 = vmatpush1.bf16.msra.mxu0 %v470
      %502 = vmatprep.subr.bf16.mxu0 0
      %503 = vmatpush2.bf16.msra.mxu0 0
      %504 = vmatprep.subr.bf16.mxu0 0
      %505 = vmatpush2.bf16.msra.mxu0 0
      %506 = vmatprep.subr.bf16.mxu0 0
      %507 = vmatpush2.bf16.msra.mxu0 0
      %508 = vmatprep.subr.bf16.mxu0 0
      %509 = vmatpush2.bf16.msra.mxu0 0
      %510 = vmatprep.subr.bf16.mxu0 0
      %511 = vmatpush2.bf16.msra.mxu0 0
      %512 = vmatprep.subr.bf16.mxu0 0
      %513 = vmatpush2.bf16.msra.mxu0 0
      %514 = vmatprep.subr.bf16.mxu0 0
      %515 = vmatpush2.bf16.msra.mxu0 0
      %516 = vmatprep.subr.bf16.mxu0 0
      %517 = vmatpush2.bf16.msra.mxu0 0
      %518 = vmatprep.mubr.bf16.mxu0 0
      %519 = vmatmul.mubr.bf16.gmra.mxu0 %v412
      %v520 = vpop.f32.mrf.mxu0
      %v521 = vadd.f32 %v437, %v520
      %v522 = vpop.f32.mrf.mxu0
      %v523 = vpop.f32.mrf.mxu0
      %v524 = vadd.f32 %v437, %v523
      %v525 = vpop.f32.mrf.mxu0
      %526 = vmatprep.mubr.bf16.mxu0 0
      %527 = vmatmul.mubr.bf16.gmra.mxu0 %v413
      %v528 = vpop.f32.mrf.mxu0
      %v529 = vadd.f32 %v437, %v528
      %v530 = vpop.f32.mrf.mxu0
      %v531 = vpop.f32.mrf.mxu0
      %v532 = vadd.f32 %v437, %v531
      %v533 = vpop.f32.mrf.mxu0
      %534 = vmatprep.mubr.bf16.mxu0 0
      %535 = vmatmul.mubr.bf16.gmra.mxu0 %v414
      %v536 = vpop.f32.mrf.mxu0
      %v537 = vadd.f32 %v437, %v536
      %v538 = vpop.f32.mrf.mxu0
      %v539 = vpop.f32.mrf.mxu0
      %v540 = vadd.f32 %v437, %v539
      %v541 = vpop.f32.mrf.mxu0
      %542 = vmatprep.mubr.bf16.mxu0 0
      %543 = vmatmul.mubr.bf16.gmra.mxu0 %v415
      %v544 = vpop.f32.mrf.mxu0
      %v545 = vadd.f32 %v437, %v544
      %v546 = vpop.f32.mrf.mxu0
      %v547 = vpop.f32.mrf.mxu0
      %v548 = vadd.f32 %v437, %v547
      %v549 = vpop.f32.mrf.mxu0
      %550 = vdwg.mxu0
      %v551 = vmax.f32 %v521, 0.0
      %v552 = vmax.f32 %v524, 0.0
      %v553 = vmax.f32 %v529, 0.0
      %v554 = vmax.f32 %v532, 0.0
      %v555 = vmax.f32 %v537, 0.0
      %v556 = vmax.f32 %v540, 0.0
      %v557 = vmax.f32 %v545, 0.0
      %v558 = vmax.f32 %v548, 0.0
      %v559 = vpack.c.bf16 %v552, %v551
      %v560 = vpack.c.bf16 %v554, %v553
      %v561 = vpack.c.bf16 %v556, %v555
      %v562 = vpack.c.bf16 %v558, %v557
      %v563 = vld [vmem:[%s2 + $0x60] sm:$0xf]
      %v564 = vld [vmem:[%s2 + $0x64] sm:$0xf]
      %v565 = vld [vmem:[%s2 + $0x68] sm:$0xf]
      %v566 = vld [vmem:[%s2 + $0x6c] sm:$0xf]
      %v567 = vld [vmem:[%s2 + $0x70] sm:$0xf]
      %v568 = vld [vmem:[%s2 + $0x74] sm:$0xf]
      %v569 = vld [vmem:[%s2 + $0x78] sm:$0xf]
      %v570 = vld [vmem:[%s2 + $0x7c] sm:$0xf]
      %v571 = vld [vmem:[%s2 + $0x80] sm:$0xf]
      %v572 = vld [vmem:[%s2 + $0x84] sm:$0xf]
      %v573 = vld [vmem:[%s2 + $0x88] sm:$0xf]
      %v574 = vld [vmem:[%s2 + $0x8c] sm:$0xf]
      %v575 = vld [vmem:[%s2 + $0x90] sm:$0xf]
      %v576 = vld [vmem:[%s2 + $0x94] sm:$0xf]
      %v577 = vld [vmem:[%s2 + $0x98] sm:$0xf]
      %v578 = vld [vmem:[%s2 + $0x9c] sm:$0xf]
      %v579 = vld [vmem:[%s2 + $0xa0] sm:$0x1]
      %v580 = vunpack.c.l.bf16 %v579
      %v581 = vlaneseq
      %v582 = vshrl.u32 %v581, 7
      %v583 = vsub.s32 0, %v582
      %v584 = vrot.slane %v580, %v583
      %v601 = vunpack.c.l.b16 %v563
      %v602 = vunpack.c.l.b16 %v564
      %v603 = vunpack.c.l.b16 %v565
      %v604 = vunpack.c.l.b16 %v566
      %v605 = vunpack.c.l.b16 %v567
      %v606 = vunpack.c.l.b16 %v568
      %v607 = vunpack.c.l.b16 %v569
      %v608 = vunpack.c.l.b16 %v570
      %v609 = vunpack.c.l.b16 %v571
      %v610 = vunpack.c.l.b16 %v572
      %v611 = vunpack.c.l.b16 %v573
      %v612 = vunpack.c.l.b16 %v574
      %v613 = vunpack.c.l.b16 %v575
      %v614 = vunpack.c.l.b16 %v576
      %v615 = vunpack.c.l.b16 %v577
      %v616 = vunpack.c.l.b16 %v578
      %v617 = vpack.c.b16 %v602, %v601
      %v618 = vpack.c.b16 %v604, %v603
      %v619 = vpack.c.b16 %v606, %v605
      %v620 = vpack.c.b16 %v608, %v607
      %v621 = vpack.c.b16 %v610, %v609
      %v622 = vpack.c.b16 %v612, %v611
      %v623 = vpack.c.b16 %v614, %v613
      %v624 = vpack.c.b16 %v616, %v615
      %633 = vmatprep.subr.bf16.mxu0 0
      %634 = vmatpush1.bf16.msra.mxu0 %v624
      %635 = vmatprep.subr.bf16.mxu0 0
      %636 = vmatpush1.bf16.msra.mxu0 %v623
      %637 = vmatprep.subr.bf16.mxu0 0
      %638 = vmatpush1.bf16.msra.mxu0 %v622
      %639 = vmatprep.subr.bf16.mxu0 0
      %640 = vmatpush1.bf16.msra.mxu0 %v621
      %641 = vmatprep.subr.bf16.mxu0 0
      %642 = vmatpush1.bf16.msra.mxu0 %v620
      %643 = vmatprep.subr.bf16.mxu0 0
      %644 = vmatpush1.bf16.msra.mxu0 %v619
      %645 = vmatprep.subr.bf16.mxu0 0
      %646 = vmatpush1.bf16.msra.mxu0 %v618
      %647 = vmatprep.subr.bf16.mxu0 0
      %648 = vmatpush1.bf16.msra.mxu0 %v617
      %649 = vmatprep.subr.bf16.mxu0 0
      %650 = vmatpush2.bf16.msra.mxu0 0
      %651 = vmatprep.subr.bf16.mxu0 0
      %652 = vmatpush2.bf16.msra.mxu0 0
      %653 = vmatprep.subr.bf16.mxu0 0
      %654 = vmatpush2.bf16.msra.mxu0 0
      %655 = vmatprep.subr.bf16.mxu0 0
      %656 = vmatpush2.bf16.msra.mxu0 0
      %657 = vmatprep.subr.bf16.mxu0 0
      %658 = vmatpush2.bf16.msra.mxu0 0
      %659 = vmatprep.subr.bf16.mxu0 0
      %660 = vmatpush2.bf16.msra.mxu0 0
      %661 = vmatprep.subr.bf16.mxu0 0
      %662 = vmatpush2.bf16.msra.mxu0 0
      %663 = vmatprep.subr.bf16.mxu0 0
      %664 = vmatpush2.bf16.msra.mxu0 0
      %665 = vmatprep.mubr.bf16.mxu0 0
      %666 = vmatmul.mubr.bf16.gmra.mxu0 %v559
      %v667 = vpop.f32.mrf.mxu0
      %v668 = vadd.f32 %v584, %v667
      %v669 = vpop.f32.mrf.mxu0
      %v670 = vpop.f32.mrf.mxu0
      %v671 = vadd.f32 %v584, %v670
      %v672 = vpop.f32.mrf.mxu0
      %673 = vmatprep.mubr.bf16.mxu0 0
      %674 = vmatmul.mubr.bf16.gmra.mxu0 %v560
      %v675 = vpop.f32.mrf.mxu0
      %v676 = vadd.f32 %v584, %v675
      %v677 = vpop.f32.mrf.mxu0
      %v678 = vpop.f32.mrf.mxu0
      %v679 = vadd.f32 %v584, %v678
      %v680 = vpop.f32.mrf.mxu0
      %681 = vmatprep.mubr.bf16.mxu0 0
      %682 = vmatmul.mubr.bf16.gmra.mxu0 %v561
      %v683 = vpop.f32.mrf.mxu0
      %v684 = vadd.f32 %v584, %v683
      %v685 = vpop.f32.mrf.mxu0
      %v686 = vpop.f32.mrf.mxu0
      %v687 = vadd.f32 %v584, %v686
      %v688 = vpop.f32.mrf.mxu0
      %689 = vmatprep.mubr.bf16.mxu0 0
      %690 = vmatmul.mubr.bf16.gmra.mxu0 %v562
      %v691 = vpop.f32.mrf.mxu0
      %v692 = vadd.f32 %v584, %v691
      %v693 = vpop.f32.mrf.mxu0
      %v694 = vpop.f32.mrf.mxu0
      %v695 = vadd.f32 %v584, %v694
      %v696 = vpop.f32.mrf.mxu0
      %697 = vdwg.mxu0
      %v698 = vpack.c.bf16 %v671, %v668
      %v699 = vpack.c.bf16 %v679, %v676
      %v700 = vpack.c.bf16 %v687, %v684
      %v701 = vpack.c.bf16 %v695, %v692
      %v706 = vunpack.c.l.b16 %v698
      %v707 = vunpack.c.h.b16 %v698
      %v708 = vunpack.c.l.b16 %v699
      %v709 = vunpack.c.h.b16 %v699
      %v710 = vunpack.c.l.b16 %v700
      %v711 = vunpack.c.h.b16 %v700
      %v712 = vunpack.c.l.b16 %v701
      %v713 = vunpack.c.h.b16 %v701
      %v714 = vpack.c.b16 %v706, %v706
      %v715 = vpack.c.b16 %v707, %v707
      %v716 = vpack.c.b16 %v708, %v708
      %v717 = vpack.c.b16 %v709, %v709
      %v718 = vpack.c.b16 %v710, %v710
      %v719 = vpack.c.b16 %v711, %v711
      %v720 = vpack.c.b16 %v712, %v712
      %v721 = vpack.c.b16 %v713, %v713
      %730 = vst [vmem:[%s194] sm:$0xf] %v714
      %731 = vst [vmem:[%s194 + $0x4] sm:$0xf] %v715
      %732 = vst [vmem:[%s194 + $0x8] sm:$0xf] %v716
      %733 = vst [vmem:[%s194 + $0xc] sm:$0xf] %v717
      %734 = vst [vmem:[%s194 + $0x10] sm:$0xf] %v718
      %735 = vst [vmem:[%s194 + $0x14] sm:$0xf] %v719
      %736 = vst [vmem:[%s194 + $0x18] sm:$0xf] %v720
      %737 = vst [vmem:[%s194 + $0x1c] sm:$0xf] %v721
      %s738 = smul.u32 8, %s14
      %p739 = scmp.lt.s32.totalorder %s738, 15
      %s740 = scalar_select %p739, %s738, 15
      %s741 = smul.addr %s740, 4
      %s742 = scalar_lea.vmem %s3, %s741
      // Predicated region
      $region33: #{qactor_forward.1} parent=31 // pred_check
        %p743 = pneg %p105
      $region34: #{qactor_forward.1} parent=31 // pred_check_branch
        %745 = sbr.rel (%p743) target = $region36
      $region35: #{qactor_forward.1} parent=31 // pred_region
        %s746 = smul.u32 8, %s14
      $region36: #{qactor_forward.1} parent=31 // pred_fallthru
        _
    $region32: #{qactor_forward.1} parent=5 // pred_fallthru
      _
    %p747 = scmp.le.s32.totalorder 2, %s9
    // Predicated region
    $region37: #{qactor_forward.1} parent=5 // pred_check
      %p748 = pneg %p747
    $region38: #{qactor_forward.1} parent=5 // pred_check_branch
      %750 = sbr.rel (%p748) target = $region40
    $region39: #{qactor_forward.1} parent=5 // pred_region
      %s751 = ssub.s32 %s9, 2
      // Predicated region
      $region41: #{qactor_forward.1} parent=39 // pred_check
        %p752 = pneg %p111
      $region42: #{qactor_forward.1} parent=39 // pred_check_branch
        %754 = sbr.rel (%p752) target = $region44
      $region43: #{qactor_forward.1} parent=39 // pred_region
        %s755 = smul.u32 8, %s15
        %p756 = scmp.lt.s32.totalorder %s755, 15
        %s757 = scalar_select %p756, %s755, 15
        %s758 = smul.addr %s757, 4
        %s759 = scalar_lea.vmem %s3, %s758
      $region44: #{qactor_forward.1} parent=39 // pred_fallthru
        _
    $region40: #{qactor_forward.1} parent=5 // pred_fallthru
      _
  $region6: #{qactor_forward.1} parent=0 // loop_footer
    %s13 = sadd.s32 1, %s9
  $region7: #{qactor_forward.1} parent=0 // loop_footer_branch
    %8 = sbr.rel target = $region3
  $region8: #{qactor_forward.1} parent=0 // loop_exit
    _

</llo_original>
